<compile_context>
chip_gen: v5e
topology: v5e:2x2
jax: 0.10.0
libtpu: 0.0.40
codegen_flags: <defaults>
</compile_context>

<pallas_src>
import functools

import jax
import jax.numpy as jnp
from jax.experimental import pallas as pl
from jax.experimental.pallas import tpu as pltpu


def _source_disc_kernel(x_ref, w_ref, b_ref, o_ref):
    # x_ref: (Bt, H) CLS activations; w_ref: (H, 2); b_ref: (1, 2); o_ref: (Bt, 2)
    logits = jnp.dot(x_ref[...], w_ref[...], preferred_element_type=jnp.float32)
    logits = logits + b_ref[...].astype(jnp.float32)      # broadcast bias over rows
    # 2-class log-softmax:  lse = l0 + softplus(l1 - l0),
    # softplus(d) = max(d, 0) + log1p(exp(-|d|)).
    # Elementwise only (VPU + EUP slots); log1p keeps precision for large gaps.
    d = logits[:, 1:2] - logits[:, 0:1]
    sp = jnp.maximum(d, 0.0) + jnp.log1p(jnp.exp(-jnp.abs(d)))
    lse = logits[:, 0:1] + sp
    o_ref[...] = (logits - lse).astype(o_ref.dtype)


def _vmem_capacity_bytes():
    # Trace-time hardware query; fall back to the most conservative (v7x-like)
    # assumption if the query is unavailable for any reason.
    try:
        return int(pltpu.get_tpu_info().vmem_capacity_bytes)
    except Exception:
        return 64 * 1024 * 1024


def _plan_tiles(batch, hidden, requested, itemsize):
    """Pick the batch tile size and scoped-VMEM limit, generation-gated."""
    vmem = _vmem_capacity_bytes()
    if vmem <= 64 * 1024 * 1024:
        # v7x-class: 64 MiB VMEM per TensorCore, 2 cores/chip.  Keep the
        # double-buffered x-tile pair small and force >= 2 batch tiles so the
        # "parallel" grid axis actually shards work across both cores.
        pair_cap_bytes = 8 * 1024 * 1024
        vmem_limit = 32 * 1024 * 1024
        min_tiles = 2 if batch >= 16 else 1
    else:
        # v5e / v6e: 128 MiB VMEM, single TensorCore.  Fewer, bigger tiles
        # amortize the ~0.35 us per-grid-step overhead.
        pair_cap_bytes = 24 * 1024 * 1024
        vmem_limit = 64 * 1024 * 1024
        min_tiles = 1

    align = 16 if itemsize == 2 else 8   # bf16 packs two rows per sublane
    cap = max(align, (pair_cap_bytes // (2 * itemsize * hidden) // align) * align)
    bt = min(requested, cap)
    if min_tiles > 1:
        per_core = -(-batch // min_tiles)                      # ceil(B / cores)
        per_core = max(align, -(-per_core // align) * align)   # round up to align
        bt = min(bt, per_core)
    bt = max(align, (bt // align) * align)
    if batch <= bt:
        return batch, vmem_limit      # single tile: block == full dim is legal
    return bt, vmem_limit


def source_discrimination(x, weight, bias, *, block_b=1024):
    """log_softmax(x[:, 0] @ weight + bias, axis=-1).

    x: (B, S, H) f32 or bf16; weight: (H, 2) (transpose of torch's (2, H));
    bias: (2,).  Returns (B, 2) float32 log-probabilities.
    """
    B, S, H = x.shape
    bias2 = bias.reshape(1, 2)
    itemsize = jnp.dtype(x.dtype).itemsize
    bt, vmem_limit = _plan_tiles(B, H, block_b, itemsize)
    grid = (pl.cdiv(B, bt),)

    if H % 128 == 0 or S == 1:
        # Fused [CLS] extraction: metadata-only reshape to (B, S*H) for the
        # row-major contiguous layout used here; the (bt, H) block at block
        # index (i, 0) strided-DMAs only the seq-0 hidden vector of each row.
        x_in = x.reshape(B, S * H)
    else:
        # Lane-unaligned H (toy sizes only): wrapper-side CLS slice fallback.
        # TODO(synk): make this path single-pass too via memory_space=pl.ANY +
        # an in-kernel strided make_async_copy of the seq-0 rows.
        x_in = x[:, 0, :]

    cost = pl.CostEstimate(
        flops=4 * B * H,                       # (B,H) @ (H,2)
        transcendentals=2 * B,                 # exp + log1p per row
        bytes_accessed=(B * H * itemsize                          # CLS reads
                        + 2 * H * jnp.dtype(weight.dtype).itemsize
                        + 2 * jnp.dtype(bias.dtype).itemsize
                        + B * 2 * 4),                             # f32 output
    )

    return pl.pallas_call(
        _source_disc_kernel,
        out_shape=jax.ShapeDtypeStruct((B, 2), jnp.float32),
        grid=grid,
        in_specs=[
            pl.BlockSpec((bt, H), lambda i: (i, 0)),    # CLS rows, tiled over batch
            # Constant index_map: weight/bias stay VMEM-resident across steps.
            pl.BlockSpec((H, 2), lambda i: (0, 0)),
            pl.BlockSpec((1, 2), lambda i: (0, 0)),
        ],
        out_specs=pl.BlockSpec((bt, 2), lambda i: (i, 0)),
        compiler_params=pltpu.CompilerParams(
            dimension_semantics=("parallel",),   # v7x: shard batch tiles over 2 TCs
            vmem_limit_bytes=vmem_limit,
        ),
        cost_estimate=cost,
    )(x_in, weight, bias2)


def _reference(x, weight, bias):
    logits = x[:, 0, :] @ weight + bias
    return jax.nn.log_softmax(logits, axis=-1)


def _init(key, B, S, H):
    kx, kw, kb = jax.random.split(key, 3)
    x = jax.random.normal(kx, (B, S, H), dtype=jnp.float32)
    bound = 1.0 / (H ** 0.5)        # mimic nn.Linear's uniform(-1/sqrt(H), 1/sqrt(H))
    weight = jax.random.uniform(kw, (H, 2), minval=-bound, maxval=bound,
                                dtype=jnp.float32)
    bias = jax.random.uniform(kb, (2,), minval=-bound, maxval=bound,
                              dtype=jnp.float32)
    return x, weight, bias


if __name__ == "__main__":
    # Config A: lane-aligned hidden -> fused-CLS path, multi-step tiled grid.
    x, w, b = _init(jax.random.PRNGKey(0), B=24, S=8, H=128)
    f = jax.jit(functools.partial(source_discrimination, block_b=8))
    out = jax.block_until_ready(f(x, w, b))
    ref = _reference(x, w, b)
    assert out.shape == (24, 2)
    assert jnp.allclose(out, ref, atol=1e-5, rtol=1e-5)

    # Config B: toy hidden=32 (not lane-aligned) -> wrapper-slice fallback path.
    x2, w2, b2 = _init(jax.random.PRNGKey(0), B=2, S=8, H=32)
    out2 = jax.block_until_ready(jax.jit(source_discrimination)(x2, w2, b2))
    ref2 = _reference(x2, w2, b2)
    assert out2.shape == (2, 2)
    assert jnp.allclose(out2, ref2, atol=1e-5, rtol=1e-5)

    # Config C: bf16 activations/weights -> halved HBM traffic, fused path,
    # auto tile planning (>= 2 tiles on v7x-class parts).
    x3, w3, b3 = _init(jax.random.PRNGKey(0), B=32, S=4, H=128)
    x3b = x3.astype(jnp.bfloat16)
    w3b = w3.astype(jnp.bfloat16)
    out3 = jax.block_until_ready(jax.jit(source_discrimination)(x3b, w3b, b3))
    ref3 = _reference(x3b.astype(jnp.float32), w3b.astype(jnp.float32), b3)
    assert out3.shape == (32, 2) and out3.dtype == jnp.float32
    assert jnp.allclose(out3, ref3, atol=2e-3, rtol=2e-3)

    print("KERNEL_OK")
</pallas_src>

<mosaic_0001>
module attributes {stable_mosaic.version = 11 : i64} {
  func.func @_source_disc_kernel(%arg0: i32, %arg1: memref<8x128xf32, #tpu.memory_space<vmem>>, %arg2: memref<128x2xf32, #tpu.memory_space<vmem>>, %arg3: memref<1x2xf32, #tpu.memory_space<vmem>>, %arg4: memref<8x2xf32, #tpu.memory_space<vmem>>) attributes {dimension_semantics = [#tpu.dimension_semantics<parallel>], iteration_bounds = array<i64: 3>, scalar_prefetch = 0 : i64, scratch_operands = 0 : i64, tpu.core_type = #tpu.core_type<tc>, window_params = [{transform_indices = @transform_0, window_bounds = array<i64: 8, 128>}, {pipeline_mode = #tpu.pipeline_mode<synchronous>, transform_indices = @transform_1, window_bounds = array<i64: 128, 2>}, {pipeline_mode = #tpu.pipeline_mode<synchronous>, transform_indices = @transform_2, window_bounds = array<i64: 1, 2>}, {transform_indices = @transform_3, window_bounds = array<i64: 8, 2>}]} {
    %c0 = arith.constant 0 : index
    %c0_0 = arith.constant 0 : index
    %0 = vector.load %arg1[%c0, %c0_0] : memref<8x128xf32, #tpu.memory_space<vmem>>, vector<8x128xf32>
    %c0_1 = arith.constant 0 : index
    %c0_2 = arith.constant 0 : index
    %1 = vector.load %arg2[%c0_1, %c0_2] : memref<128x2xf32, #tpu.memory_space<vmem>>, vector<128x2xf32>
    %cst = arith.constant dense<0.000000e+00> : vector<8x2xf32>
    %2 = tpu.matmul %0, %1, %cst {dimension_numbers = #tpu.dot_dimension_numbers<[1], [0], [0], [1], [0, 0, 1, 1], [], []>} : vector<8x128xf32>, vector<128x2xf32>, vector<8x2xf32> -> vector<8x2xf32>
    %c0_3 = arith.constant 0 : index
    %c0_4 = arith.constant 0 : index
    %3 = vector.load %arg3[%c0_3, %c0_4] : memref<1x2xf32, #tpu.memory_space<vmem>>, vector<1x2xf32>
    %4 = vector.broadcast %3 : vector<1x2xf32> to vector<8x2xf32>
    %5 = arith.addf %2, %4 : vector<8x2xf32>
    %6 = vector.extract_strided_slice %5 {offsets = [0, 1], sizes = [8, 1], strides = [1, 1]} : vector<8x2xf32> to vector<8x1xf32>
    %7 = vector.extract_strided_slice %5 {offsets = [0, 0], sizes = [8, 1], strides = [1, 1]} : vector<8x2xf32> to vector<8x1xf32>
    %8 = arith.subf %6, %7 : vector<8x1xf32>
    %cst_5 = arith.constant 0.000000e+00 : f32
    %9 = vector.broadcast %cst_5 : f32 to vector<8x1xf32>
    %10 = arith.maximumf %8, %9 : vector<8x1xf32>
    %11 = math.absf %8 : vector<8x1xf32>
    %cst_6 = arith.constant 0.000000e+00 : f32
    %12 = vector.broadcast %cst_6 : f32 to vector<8x1xf32>
    %13 = arith.subf %12, %11 : vector<8x1xf32>
    %14 = math.exp %13 : vector<8x1xf32>
    %15 = math.log1p %14 : vector<8x1xf32>
    %16 = arith.addf %10, %15 : vector<8x1xf32>
    %17 = vector.extract_strided_slice %5 {offsets = [0, 0], sizes = [8, 1], strides = [1, 1]} : vector<8x2xf32> to vector<8x1xf32>
    %18 = arith.addf %17, %16 : vector<8x1xf32>
    %19 = vector.broadcast %18 : vector<8x1xf32> to vector<8x2xf32>
    %20 = arith.subf %5, %19 : vector<8x2xf32>
    %c0_7 = arith.constant 0 : index
    %c0_8 = arith.constant 0 : index
    %21 = vector.load %arg4[%c0_7, %c0_8] : memref<8x2xf32, #tpu.memory_space<vmem>>, vector<8x2xf32>
    tpu.vector_store %arg4[%c0_7, %c0_8], %20 {strides = array<i32>} : memref<8x2xf32, #tpu.memory_space<vmem>>, vector<8x2xf32>,
    return
  }
  func.func @transform_0(%arg0: i32) -> (i32, i32) {
    %c0_i32 = arith.constant 0 : i32
    %c0_i32_0 = arith.constant 0 : i32
    return %arg0, %c0_i32 : i32, i32
  }
  func.func @transform_1(%arg0: i32) -> (i32, i32) {
    %c0_i32 = arith.constant 0 : i32
    %c0_i32_0 = arith.constant 0 : i32
    %c0_i32_1 = arith.constant 0 : i32
    return %c0_i32, %c0_i32_0 : i32, i32
  }
  func.func @transform_2(%arg0: i32) -> (i32, i32) {
    %c0_i32 = arith.constant 0 : i32
    %c0_i32_0 = arith.constant 0 : i32
    %c0_i32_1 = arith.constant 0 : i32
    return %c0_i32, %c0_i32_0 : i32, i32
  }
  func.func @transform_3(%arg0: i32) -> (i32, i32) {
    %c0_i32 = arith.constant 0 : i32
    %c0_i32_0 = arith.constant 0 : i32
    return %arg0, %c0_i32 : i32, i32
  }
}

</mosaic_0001>

<llo_original>
// kernel: source_discrimination.1
$region0: #{source_discrimination.1}
  #allocation0 [shape = 'u32[]', space=smem, size = 0x4, offset = 0x4, fixed_abs, tag = 'smem constant byte address 0x4 - core index']
  #allocation1 [shape = 'u32[72,128]{1,0:T(1,128)}', space=vmem, size = 0x9000, scoped, tag = 'internal scratch']
  %s0 = inlined_call_operand.vmem [shape: f32[24,1024], index: 0, kind: input, shape index: {}]
  %s1 = inlined_call_operand.vmem [shape: f32[128,2], index: 1, kind: input, shape index: {}]
  %s2 = inlined_call_operand.vmem [shape: f32[1,2], index: 2, kind: input, shape index: {}]
  %s3 = inlined_call_operand.vmem [shape: f32[24,2], index: 3, kind: output, shape index: {}]
  %s4 = sld [smem:[#allocation0]]
  $region45: #{source_discrimination.1} parent=0
    _
  %s6 = ssub.s32 1, %s4
  %s7 = scalar_select 0, %s6, %s4
  loop: start=0, step=1, limit=5
  $region2: #{source_discrimination.1} parent=0 // loop_pre_header
    _
  $region3: #{source_discrimination.1} parent=0 // loop_header
    %s9 = sphi 0, %s13
    %p10 = scmp.ge.s32.totalorder %s9, 5
    %s19 = sphi 0, %s21
    %s22 = sphi 0, %s19
    %s23 = sphi 0, %s22
    %s39 = sphi 0, %s23
    %s43 = sphi 0, %s43
    %s45 = sphi 0, %s43
    %s46 = sphi 0, %s45
    %s60 = sphi 0, %s46
    %s64 = sphi 0, %s64
    %s66 = sphi 0, %s64
    %s67 = sphi 0, %s66
    %s81 = sphi 0, %s67
    %s87 = sphi 0, %s89
    %s90 = sphi 0, %s87
    %s91 = sphi 0, %s90
    %s107 = sphi 0, %s91
  $region4: #{source_discrimination.1} parent=0 // loop_header_branch
    %12 = sbr.rel (%p10) target = $region8
  $region5: #{source_discrimination.1} parent=0 // loop_body
    %s14 = ssub.s32 %s9, 1
    %s15 = ssub.s32 %s9, 2
    %s16 = sadd.s32 %s9, 1
    %s17 = ssub.s32 %s9, %s16
    %p18 = scmp.eq.s32.totalorder %s17, 0
    %s20 = sadd.s32 %s19, 1
    %s21 = scalar_select %p18, %s19, %s20
    %p24 = pneg %p18
    %p25 = scmp.eq.s32.totalorder %s9, 2
    %p26 = por %p24, %p25
    %p27 = scmp.ne.s32.totalorder %s19, %s22
    %p28 = scmp.eq.s32.totalorder %s9, 0
    %p29 = por %p27, %p28
    %p30 = scmp.ne.s32.totalorder %s19, %s22
    %p31 = scmp.eq.s32.totalorder %s14, 2
    %p32 = por %p30, %p31
    %p33 = scmp.ne.s32.totalorder %s22, %s23
    %p34 = scmp.eq.s32.totalorder %s14, 0
    %p35 = por %p33, %p34
    %p36 = scmp.ne.s32.totalorder %s22, %s23
    %p37 = scmp.eq.s32.totalorder %s15, 2
    %p38 = por %p36, %p37
    %p40 = scmp.ne.s32.totalorder %s23, %s39
    %p41 = scmp.eq.s32.totalorder %s15, 0
    %p42 = por %p40, %p41
    %s44 = sadd.s32 %s43, 1
    %p47 = scmp.eq.s32.totalorder %s9, 2
    %p48 = scmp.ne.s32.totalorder %s43, %s45
    %p49 = scmp.eq.s32.totalorder %s9, 0
    %p50 = por %p48, %p49
    %p51 = scmp.ne.s32.totalorder %s43, %s45
    %p52 = scmp.eq.s32.totalorder %s14, 2
    %p53 = por %p51, %p52
    %p54 = scmp.ne.s32.totalorder %s45, %s46
    %p55 = scmp.eq.s32.totalorder %s14, 0
    %p56 = por %p54, %p55
    %p57 = scmp.ne.s32.totalorder %s45, %s46
    %p58 = scmp.eq.s32.totalorder %s15, 2
    %p59 = por %p57, %p58
    %p61 = scmp.ne.s32.totalorder %s46, %s60
    %p62 = scmp.eq.s32.totalorder %s15, 0
    %p63 = por %p61, %p62
    %s65 = sadd.s32 %s64, 1
    %p68 = scmp.eq.s32.totalorder %s9, 2
    %p69 = scmp.ne.s32.totalorder %s64, %s66
    %p70 = scmp.eq.s32.totalorder %s9, 0
    %p71 = por %p69, %p70
    %p72 = scmp.ne.s32.totalorder %s64, %s66
    %p73 = scmp.eq.s32.totalorder %s14, 2
    %p74 = por %p72, %p73
    %p75 = scmp.ne.s32.totalorder %s66, %s67
    %p76 = scmp.eq.s32.totalorder %s14, 0
    %p77 = por %p75, %p76
    %p78 = scmp.ne.s32.totalorder %s66, %s67
    %p79 = scmp.eq.s32.totalorder %s15, 2
    %p80 = por %p78, %p79
    %p82 = scmp.ne.s32.totalorder %s67, %s81
    %p83 = scmp.eq.s32.totalorder %s15, 0
    %p84 = por %p82, %p83
    %s85 = ssub.s32 %s9, %s16
    %p86 = scmp.eq.s32.totalorder %s85, 0
    %s88 = sadd.s32 %s87, 1
    %s89 = scalar_select %p86, %s87, %s88
    %p92 = pneg %p86
    %p93 = scmp.eq.s32.totalorder %s9, 2
    %p94 = por %p92, %p93
    %p95 = scmp.ne.s32.totalorder %s87, %s90
    %p96 = scmp.eq.s32.totalorder %s9, 0
    %p97 = por %p95, %p96
    %p98 = scmp.ne.s32.totalorder %s87, %s90
    %p99 = scmp.eq.s32.totalorder %s14, 2
    %p100 = por %p98, %p99
    %p101 = scmp.ne.s32.totalorder %s90, %s91
    %p102 = scmp.eq.s32.totalorder %s14, 0
    %p103 = por %p101, %p102
    %p104 = scmp.ne.s32.totalorder %s90, %s91
    %p105 = scmp.eq.s32.totalorder %s15, 2
    %p106 = por %p104, %p105
    %p108 = scmp.ne.s32.totalorder %s91, %s107
    %p109 = scmp.eq.s32.totalorder %s15, 0
    %p110 = por %p108, %p109
    %p111 = scmp.le.s32.totalorder 1, %s9
    %p112 = scmp.lt.s32.totalorder %s9, 4
    %p113 = pnand %p111, %p112
    %p114 = pneg %p113
    // Predicated region
    $region9: #{source_discrimination.1} parent=5 // pred_check
      _
    $region10: #{source_discrimination.1} parent=5 // pred_check_branch
      %116 = sbr.rel (%p113) target = $region12
    $region11: #{source_discrimination.1} parent=5 // pred_region
      %s117 = ssub.s32 %s9, 1
      // Predicated region
      $region13: #{source_discrimination.1} parent=11 // pred_check
        %p118 = pneg %p56
      $region14: #{source_discrimination.1} parent=11 // pred_check_branch
        %120 = sbr.rel (%p118) target = $region16
      $region15: #{source_discrimination.1} parent=11 // pred_region
        _
      $region16: #{source_discrimination.1} parent=11 // pred_fallthru
        _
      // Predicated region
      $region17: #{source_discrimination.1} parent=11 // pred_check
        %p121 = pneg %p77
      $region18: #{source_discrimination.1} parent=11 // pred_check_branch
        %123 = sbr.rel (%p121) target = $region20
      $region19: #{source_discrimination.1} parent=11 // pred_region
        _
      $region20: #{source_discrimination.1} parent=11 // pred_fallthru
        _
    $region12: #{source_discrimination.1} parent=5 // pred_fallthru
      _
    %p124 = scmp.lt.s32.totalorder %s9, 3
    // Predicated region
    $region21: #{source_discrimination.1} parent=5 // pred_check
      %p125 = pneg %p124
    $region22: #{source_discrimination.1} parent=5 // pred_check_branch
      %127 = sbr.rel (%p125) target = $region24
    $region23: #{source_discrimination.1} parent=5 // pred_region
      // Predicated region
      $region25: #{source_discrimination.1} parent=23 // pred_check
        %p128 = pneg %p29
      $region26: #{source_discrimination.1} parent=23 // pred_check_branch
        %130 = sbr.rel (%p128) target = $region28
      $region27: #{source_discrimination.1} parent=23 // pred_region
        %p131 = scmp.lt.s32.totalorder %s9, 2
        %s132 = scalar_select %p131, %s9, 2
        %s133 = smul.addr %s132, 8
        %s134 = smul.addr %s133, 8
        %s135 = scalar_lea.vmem %s0, %s134
      $region28: #{source_discrimination.1} parent=23 // pred_fallthru
        _
    $region24: #{source_discrimination.1} parent=5 // pred_fallthru
      _
    %p136 = scmp.le.s32.totalorder 1, %s9
    %p137 = scmp.lt.s32.totalorder %s9, 4
    %p138 = pnand %p136, %p137
    %p139 = pneg %p138
    // Predicated region
    $region29: #{source_discrimination.1} parent=5 // pred_check
      _
    $region30: #{source_discrimination.1} parent=5 // pred_check_branch
      %141 = sbr.rel (%p138) target = $region32
    $region31: #{source_discrimination.1} parent=5 // pred_region
      %s142 = ssub.s32 %s9, 1
      %p143 = scmp.lt.s32.totalorder %s14, 2
      %s144 = scalar_select %p143, %s14, 2
      %s145 = smul.addr %s144, 8
      %s146 = smul.addr %s145, 8
      %s147 = scalar_lea.vmem %s0, %s146
      %p148 = pneg %p35
      %p149 = pneg %p32
      %p150 = pneg %p56
      %p151 = pneg %p53
      %p152 = pneg %p77
      %p153 = pneg %p74
      %p154 = pneg %p103
      %p155 = pneg %p100
      %p156 = scmp.lt.s32.totalorder %s14, 2
      %s157 = scalar_select %p156, %s14, 2
      %s158 = smul.addr %s157, 8
      %s159 = scalar_lea.vmem %s3, %s158
      %p160 = scmp.lt.s32.totalorder %s14, 2
      %s161 = scalar_select %p160, %s14, 2
      %s162 = smul.addr %s161, 8
      %s163 = smul.addr %s162, 8
      %s164 = scalar_lea.vmem %s0, %s163
      %p165 = scmp.lt.s32.totalorder %s14, 2
      %s166 = scalar_select %p165, %s14, 2
      %s167 = smul.addr %s166, 8
      %s168 = scalar_lea.vmem %s3, %s167
      %v169 = vld [vmem:[%s164] sm:$0xff]
      %v170 = vld [vmem:[%s1] sm:$0xff]
      %v171 = vld [vmem:[%s1 + $0x8] sm:$0xff]
      %v172 = vld [vmem:[%s1 + $0x10] sm:$0xff]
      %v173 = vld [vmem:[%s1 + $0x18] sm:$0xff]
      %v174 = vld [vmem:[%s1 + $0x20] sm:$0xff]
      %v175 = vld [vmem:[%s1 + $0x28] sm:$0xff]
      %v176 = vld [vmem:[%s1 + $0x30] sm:$0xff]
      %v177 = vld [vmem:[%s1 + $0x38] sm:$0xff]
      %v178 = vld [vmem:[%s1 + $0x40] sm:$0xff]
      %v179 = vld [vmem:[%s1 + $0x48] sm:$0xff]
      %v180 = vld [vmem:[%s1 + $0x50] sm:$0xff]
      %v181 = vld [vmem:[%s1 + $0x58] sm:$0xff]
      %v182 = vld [vmem:[%s1 + $0x60] sm:$0xff]
      %v183 = vld [vmem:[%s1 + $0x68] sm:$0xff]
      %v184 = vld [vmem:[%s1 + $0x70] sm:$0xff]
      %v185 = vld [vmem:[%s1 + $0x78] sm:$0xff]
      %v186 = vld [vmem:[%s2] sm:$0x1]
      %v188 = vperm.slane %v186, 0
      %190 = vmatpush.msra.mxu0 %v185
      %191 = vmatpush.msra.mxu0 %v184
      %192 = vmatpush.msra.mxu0 %v183
      %193 = vmatpush.msra.mxu0 %v182
      %194 = vmatpush.msra.mxu0 %v181
      %195 = vmatpush.msra.mxu0 %v180
      %196 = vmatpush.msra.mxu0 %v179
      %197 = vmatpush.msra.mxu0 %v178
      %198 = vmatpush.msra.mxu0 %v177
      %199 = vmatpush.msra.mxu0 %v176
      %200 = vmatpush.msra.mxu0 %v175
      %201 = vmatpush.msra.mxu0 %v174
      %202 = vmatpush.msra.mxu0 %v173
      %203 = vmatpush.msra.mxu0 %v172
      %204 = vmatpush.msra.mxu0 %v171
      %205 = vmatpush.msra.mxu0 %v170
      %206 = vmatmul.f32.gmra.mxu0 %v169
      %v207 = vpop.f32.mrf.mxu0
      %v208 = vadd.f32 %v188, %v207
      %209 = vdwg.mxu0
      %211 = vrot.lane.b32.xlu0 %v208, 1
      %v212 = vpop.permute.xlu0 %211
      %v214 = vsub.f32 %v208, %v212
      %v215 = vmax.f32 %v214, 0.0
      %v216 = vand.u32 2147483647, %v214
      %v217 = vsub.f32 0.0, %v216
      %v218 = vmul.f32 %v217, 1.442695
      %v219 = vpow.pop %v218
      %v220 = vadd.f32 %v219, 1.0
      %v221 = vlog2.pop %v220
      %v222 = vmul.f32 %v221, 0.6931472
      %v223 = vmul.f32 -0.5, %v219
      %v224 = vadd.f32 %v223, 1.0
      %v225 = vmul.f32 %v224, %v219
      %v226 = vand.u32 2147483647, %v219
      %vm227 = vcmp.lt.f32.partialorder %v226, 0.0004427343
      %v228 = vsel %vm227, %v225, %v222
      %v229 = vadd.f32 %v215, %v228
      %231 = vrot.lane.b32.xlu0 %v229, 127
      %v232 = vpop.permute.xlu0 %231
      %v234 = vadd.f32 %v208, %v232
      %236 = vset.pattern.permute.xlu0 0
      %237 = vperm.xlu0 %236, %v234
      %v238 = vpop.permute.xlu0 %237
      %v240 = vsub.f32 %v208, %v238
      %vm241 = vcmask 15360
      %242 = vst.msk [vmem:[%s168] sm:$0xff] %vm241, %v240
      %p243 = scmp.lt.s32.totalorder %s14, 2
      %s244 = scalar_select %p243, %s14, 2
      %s245 = smul.addr %s244, 8
      %s246 = scalar_lea.vmem %s3, %s245
      // Predicated region
      $region33: #{source_discrimination.1} parent=31 // pred_check
        %p247 = pneg %p100
      $region34: #{source_discrimination.1} parent=31 // pred_check_branch
        %249 = sbr.rel (%p247) target = $region36
      $region35: #{source_discrimination.1} parent=31 // pred_region
        _
      $region36: #{source_discrimination.1} parent=31 // pred_fallthru
        _
    $region32: #{source_discrimination.1} parent=5 // pred_fallthru
      _
    %p250 = scmp.le.s32.totalorder 2, %s9
    // Predicated region
    $region37: #{source_discrimination.1} parent=5 // pred_check
      %p251 = pneg %p250
    $region38: #{source_discrimination.1} parent=5 // pred_check_branch
      %253 = sbr.rel (%p251) target = $region40
    $region39: #{source_discrimination.1} parent=5 // pred_region
      %s254 = ssub.s32 %s9, 2
      // Predicated region
      $region41: #{source_discrimination.1} parent=39 // pred_check
        %p255 = pneg %p106
      $region42: #{source_discrimination.1} parent=39 // pred_check_branch
        %257 = sbr.rel (%p255) target = $region44
      $region43: #{source_discrimination.1} parent=39 // pred_region
        %p258 = scmp.lt.s32.totalorder %s15, 2
        %s259 = scalar_select %p258, %s15, 2
        %s260 = smul.addr %s259, 8
        %s261 = scalar_lea.vmem %s3, %s260
      $region44: #{source_discrimination.1} parent=39 // pred_fallthru
        _
    $region40: #{source_discrimination.1} parent=5 // pred_fallthru
      _
  $region6: #{source_discrimination.1} parent=0 // loop_footer
    %s13 = sadd.s32 1, %s9
  $region7: #{source_discrimination.1} parent=0 // loop_footer_branch
    %8 = sbr.rel target = $region3
  $region8: #{source_discrimination.1} parent=0 // loop_exit
    _

</llo_original>
